<compile_context>
chip_gen: v6e
topology: v6e:2x2x1
jax: 0.10.0
libtpu: 0.0.40
codegen_flags: <defaults>
</compile_context>

<pallas_src>
import jax
import jax.numpy as jnp
from jax.experimental import pallas as pl
from jax.experimental.pallas import tpu as pltpu

EPS = 1e-5
N = 16          # total residues (nodes) across the batch
B = 2           # graphs in the batch (batch_id in [0, B))
C = 20          # amino-acid one-hot classes
A = 14          # atoms kept per residue (coords[:, :14])
POS_F = A * 3   # 42 flattened coordinate features
H = 32          # hidden width of synthetic velocity model v

# ---- packed-slab layout ----------------------------------------------------
# node slab [N, 128]:
#   col 0      : t (per-node time, gathered by batch_id)
#   col 1      : aa_mask
#   cols 2:22  : aa one-hot            (clean aa)
#   cols 22:64 : bb_crds flattened     (clean pos)
#   cols 64:66 : zero padding
#   cols 66:86 : randn_like(aa)        (aa noise, mirrors cols 2:22)
#   cols 86:128: randn_like(bb_crds)   (pos noise, mirrors cols 22:64)
#
# weight slab [208, 128]:
#   rows 0:64   : fused W_in  (row 0 = wt, row 1 = 0, rows 2:22 = waa_in,
#                              rows 22:64 = wy_in; cols 0:H valid, rest 0)
#   row  64     : b1   (cols 0:H)
#   rows 72:200 : fused W_out (rows 72:72+H valid; cols 2:22 = waa_out,
#                              cols 22:64 = wpos_out)
#   row  200    : b_out (cols 2:22 = baa, cols 22:64 = bpos)


def _flow_loss_kernel(node_ref, w_ref, out_ref):
    node = node_ref[...]                        # [N, 128]
    t = node[:, 0:1]                            # [N, 1]
    mask = node[:, 1:2]                         # [N, 1]  aa_mask
    clean = node[:, 0:64]                       # [t, mask, aa, bb]
    mnoise = mask * node[:, 64:128]             # [0, 0, aa_z*mask, z*mask]

    coef = EPS + (1.0 - EPS) * t
    interp = (1.0 - t) * clean + coef * mnoise  # cols 2:22 aa_y ; 22:64 y
    col = jax.lax.broadcasted_iota(jnp.int32, interp.shape, 1)
    x_in = jnp.where(col < 2, clean, interp)    # [N,64] = [t, mask, aa_y, y]
    target = (1.0 - EPS) * mnoise - clean       # cols 2:22 aa_u ; 22:64 u

    w_in = w_ref[0:64, :]                       # fused [wt; 0; waa_in; wy_in]
    b1 = w_ref[64:65, :]
    w_out = w_ref[72:200, :]                    # fused [waa_out | wpos_out]
    b_out = w_ref[200:201, :]

    # synthetic velocity model v: per-node MLP, one MXU pass per layer
    h = jnp.tanh(jnp.dot(x_in, w_in, preferred_element_type=jnp.float32) + b1)
    pred = jnp.dot(h, w_out, preferred_element_type=jnp.float32) + b_out   # [N,128]

    err = pred[:, 0:64] - target                # cols 0,1 excluded by lane_w
    lane_w = jnp.where(col < 2, 0.0, jnp.where(col < 2 + C, 0.5, 1.0))
    # loss = loss_pos + 0.5 * loss_aa, single reduction, single divide
    out_ref[0, 0] = jnp.sum(err * err * lane_w) / jnp.sum(mask)


def pack_inputs(t_node, mask, aa_onehot, bb_flat, z_flat, aa_z, params):
    n = t_node.shape[0]
    node = jnp.concatenate(
        [t_node, mask, aa_onehot, bb_flat,
         jnp.zeros((n, 2), jnp.float32), aa_z, z_flat], axis=1)   # [N, 128]

    w = jnp.zeros((208, 128), jnp.float32)
    w = w.at[0, :H].set(params["wt"][0])
    w = w.at[2:2 + C, :H].set(params["waa_in"])
    w = w.at[2 + C:64, :H].set(params["wy_in"])
    w = w.at[64, :H].set(params["b1"][0])
    w = w.at[72:72 + H, 2:2 + C].set(params["waa_out"])
    w = w.at[72:72 + H, 2 + C:64].set(params["wpos_out"])
    w = w.at[200, 2:2 + C].set(params["baa"][0])
    w = w.at[200, 2 + C:64].set(params["bpos"][0])
    return node, w


def flow_matching_loss(t_node, mask, aa_onehot, bb_flat, z_flat, aa_z, params):
    node, w = pack_inputs(t_node, mask, aa_onehot, bb_flat, z_flat, aa_z, params)
    vmem = pl.BlockSpec(memory_space=pltpu.MemorySpace.VMEM)
    out = pl.pallas_call(
        _flow_loss_kernel,
        out_shape=jax.ShapeDtypeStruct((1, 1), jnp.float32),
        in_specs=[vmem, vmem],
        out_specs=pl.BlockSpec(memory_space=pltpu.MemorySpace.SMEM),
    )(node, w)
    return out[0, 0]


def reference_loss(t_node, mask, aa_onehot, bb_flat, z_flat, aa_z, params):
    """Pure-JAX reference with the original (unfused) math."""
    z = z_flat * mask
    aaz = aa_z * mask
    coef = EPS + (1.0 - EPS) * t_node
    y = (1.0 - t_node) * bb_flat + coef * z
    u = (1.0 - EPS) * z - bb_flat
    aa_y = (1.0 - t_node) * aa_onehot + coef * aaz
    aa_u = (1.0 - EPS) * aaz - aa_onehot
    h = jnp.tanh(t_node * params["wt"] + aa_y @ params["waa_in"]
                 + y @ params["wy_in"] + params["b1"])
    pred_aa = h @ params["waa_out"] + params["baa"]
    pred_pos = h @ params["wpos_out"] + params["bpos"]
    msum = jnp.sum(mask)
    return (jnp.sum((pred_pos - u) ** 2) / msum
            + 0.5 * jnp.sum((pred_aa - aa_u) ** 2) / msum)


if __name__ == "__main__":
    key = jax.random.PRNGKey(0)
    ks = jax.random.split(key, 12)

    # ----- synthetic "batch" (shapes mirror the PyTorch graph batch) -----
    coords = jax.random.normal(ks[0], (N, 16, 3), jnp.float32)          # batch.pos
    aa_cls = jax.random.randint(ks[1], (N,), 0, C)
    aa_onehot = jax.nn.one_hot(aa_cls, C, dtype=jnp.float32)            # batch.aa_onehot
    aa_mask = (jax.random.uniform(ks[2], (N,)) > 0.2).astype(jnp.float32)
    aa_mask = aa_mask.at[0].set(1.0)                                    # batch.aa_mask (sum > 0)
    atom_mask = (jax.random.uniform(ks[3], (N, 16)) > 0.1).astype(jnp.float32)  # batch.atom_mask
    batch_id = jnp.concatenate([jnp.zeros(N // 2, jnp.int32),
                                jnp.ones(N - N // 2, jnp.int32)])       # batch.batch
    edge_index = jax.random.randint(ks[4], (2, 24), 0, N)               # batch.edge_index (unused by synthetic v)

    # ----- forward-pass randomness (torch.rand / torch.randn equivalents) -----
    t_per_graph = jax.random.uniform(ks[5], (B, 1), jnp.float32)        # t ~ U[0,1) per graph
    t_node = t_per_graph[batch_id]                                      # t[batch_id], [N, 1]
    z_flat = jax.random.normal(ks[6], (N, POS_F), jnp.float32)          # randn_like(bb_crds), flattened
    aa_z = jax.random.normal(ks[7], (N, C), jnp.float32)                # randn_like(aa)

    # ----- glue: slice / flatten -----
    bb_flat = coords[:, :A, :].reshape(N, POS_F)                        # coords[:, :14] -> [N, 42]
    _ = atom_mask[:, :A]                                                # atom_mask[:, :14] (synthetic v ignores it)
    mask = aa_mask.reshape(N, 1)

    # ----- deterministic synthetic weights for v -----
    params = {
        "wt":       0.1 * jax.random.normal(ks[8],  (1, H),     jnp.float32),
        "waa_in":   0.1 * jax.random.normal(ks[9],  (C, H),     jnp.float32),
        "wy_in":    0.1 * jax.random.normal(ks[10], (POS_F, H), jnp.float32),
        "b1":       jnp.zeros((1, H), jnp.float32),
        "waa_out":  0.1 * jax.random.normal(ks[11], (H, C),     jnp.float32),
        "baa":      jnp.zeros((1, C), jnp.float32),
        "wpos_out": 0.1 * jax.random.normal(ks[0],  (H, POS_F), jnp.float32),
        "bpos":     jnp.zeros((1, POS_F), jnp.float32),
    }

    loss = flow_matching_loss(t_node, mask, aa_onehot, bb_flat, z_flat, aa_z, params)
    loss = jax.block_until_ready(loss)

    ref = reference_loss(t_node, mask, aa_onehot, bb_flat, z_flat, aa_z, params)
    assert jnp.isfinite(loss), "kernel produced non-finite loss"
    assert jnp.allclose(loss, ref, rtol=1e-4, atol=1e-4), (loss, ref)

    print("KERNEL_OK")
</pallas_src>

<mosaic_0001>
module attributes {stable_mosaic.version = 11 : i64} {
  func.func @_flow_loss_kernel(%arg0: memref<16x128xf32, #tpu.memory_space<vmem>>, %arg1: memref<208x128xf32, #tpu.memory_space<vmem>>, %arg2: memref<1x1xf32, #tpu.memory_space<smem>>) attributes {dimension_semantics = [], scalar_prefetch = 0 : i64, scratch_operands = 0 : i64, tpu.core_type = #tpu.core_type<tc>} {
    %c0 = arith.constant 0 : index
    %c0_0 = arith.constant 0 : index
    %0 = vector.load %arg0[%c0, %c0_0] : memref<16x128xf32, #tpu.memory_space<vmem>>, vector<16x128xf32>
    %1 = vector.extract_strided_slice %0 {offsets = [0, 0], sizes = [16, 1], strides = [1, 1]} : vector<16x128xf32> to vector<16x1xf32>
    %2 = vector.extract_strided_slice %0 {offsets = [0, 1], sizes = [16, 1], strides = [1, 1]} : vector<16x128xf32> to vector<16x1xf32>
    %3 = vector.extract_strided_slice %0 {offsets = [0, 0], sizes = [16, 64], strides = [1, 1]} : vector<16x128xf32> to vector<16x64xf32>
    %4 = vector.extract_strided_slice %0 {offsets = [0, 64], sizes = [16, 64], strides = [1, 1]} : vector<16x128xf32> to vector<16x64xf32>
    %5 = vector.broadcast %2 : vector<16x1xf32> to vector<16x64xf32>
    %6 = arith.mulf %5, %4 : vector<16x64xf32>
    %cst = arith.constant 0.999989986 : f32
    %7 = vector.broadcast %cst : f32 to vector<16x1xf32>
    %8 = arith.mulf %7, %1 : vector<16x1xf32>
    %cst_1 = arith.constant 9.99999974E-6 : f32
    %9 = vector.broadcast %cst_1 : f32 to vector<16x1xf32>
    %10 = arith.addf %9, %8 : vector<16x1xf32>
    %cst_2 = arith.constant 1.000000e+00 : f32
    %11 = vector.broadcast %cst_2 : f32 to vector<16x1xf32>
    %12 = arith.subf %11, %1 : vector<16x1xf32>
    %13 = vector.broadcast %12 : vector<16x1xf32> to vector<16x64xf32>
    %14 = arith.mulf %13, %3 : vector<16x64xf32>
    %15 = vector.broadcast %10 : vector<16x1xf32> to vector<16x64xf32>
    %16 = arith.mulf %15, %6 : vector<16x64xf32>
    %17 = arith.addf %14, %16 : vector<16x64xf32>
    %18 = tpu.iota {dimensions = array<i32: 1>} : vector<16x64xi32>
    %c2_i32 = arith.constant 2 : i32
    %19 = vector.broadcast %c2_i32 : i32 to vector<16x64xi32>
    %20 = arith.cmpi slt, %18, %19 : vector<16x64xi32>
    %21 = arith.select %20, %3, %17 : vector<16x64xi1>, vector<16x64xf32>
    %cst_3 = arith.constant 0.999989986 : f32
    %22 = vector.broadcast %cst_3 : f32 to vector<16x64xf32>
    %23 = arith.mulf %22, %6 : vector<16x64xf32>
    %24 = arith.subf %23, %3 : vector<16x64xf32>
    %c0_4 = arith.constant 0 : index
    %c0_5 = arith.constant 0 : index
    %25 = vector.load %arg1[%c0_4, %c0_5] : memref<208x128xf32, #tpu.memory_space<vmem>>, vector<64x128xf32>
    %c64 = arith.constant 64 : index
    %c0_6 = arith.constant 0 : index
    %26 = vector.load %arg1[%c64, %c0_6] : memref<208x128xf32, #tpu.memory_space<vmem>>, vector<1x128xf32>
    %c72 = arith.constant 72 : index
    %c0_7 = arith.constant 0 : index
    %27 = vector.load %arg1[%c72, %c0_7] : memref<208x128xf32, #tpu.memory_space<vmem>>, vector<128x128xf32>
    %c200 = arith.constant 200 : index
    %c0_8 = arith.constant 0 : index
    %28 = vector.load %arg1[%c200, %c0_8] : memref<208x128xf32, #tpu.memory_space<vmem>>, vector<1x128xf32>
    %cst_9 = arith.constant dense<0.000000e+00> : vector<16x128xf32>
    %29 = tpu.matmul %21, %25, %cst_9 {dimension_numbers = #tpu.dot_dimension_numbers<[1], [0], [0], [1], [0, 0, 1, 1], [], []>} : vector<16x64xf32>, vector<64x128xf32>, vector<16x128xf32> -> vector<16x128xf32>
    %30 = vector.broadcast %26 : vector<1x128xf32> to vector<16x128xf32>
    %31 = arith.addf %29, %30 : vector<16x128xf32>
    %32 = math.tanh %31 : vector<16x128xf32>
    %cst_10 = arith.constant dense<0.000000e+00> : vector<16x128xf32>
    %33 = tpu.matmul %32, %27, %cst_10 {dimension_numbers = #tpu.dot_dimension_numbers<[1], [0], [0], [1], [0, 0, 1, 1], [], []>} : vector<16x128xf32>, vector<128x128xf32>, vector<16x128xf32> -> vector<16x128xf32>
    %34 = vector.broadcast %28 : vector<1x128xf32> to vector<16x128xf32>
    %35 = arith.addf %33, %34 : vector<16x128xf32>
    %36 = vector.extract_strided_slice %35 {offsets = [0, 0], sizes = [16, 64], strides = [1, 1]} : vector<16x128xf32> to vector<16x64xf32>
    %37 = arith.subf %36, %24 : vector<16x64xf32>
    %c2_i32_11 = arith.constant 2 : i32
    %38 = vector.broadcast %c2_i32_11 : i32 to vector<16x64xi32>
    %39 = arith.cmpi slt, %18, %38 : vector<16x64xi32>
    %c22_i32 = arith.constant 22 : i32
    %40 = vector.broadcast %c22_i32 : i32 to vector<16x64xi32>
    %41 = arith.cmpi slt, %18, %40 : vector<16x64xi32>
    %cst_12 = arith.constant 5.000000e-01 : f32
    %cst_13 = arith.constant 1.000000e+00 : f32
    %42 = vector.broadcast %cst_12 : f32 to vector<16x64xf32>
    %43 = vector.broadcast %cst_13 : f32 to vector<16x64xf32>
    %44 = arith.select %41, %42, %43 : vector<16x64xi1>, vector<16x64xf32>
    %cst_14 = arith.constant 0.000000e+00 : f32
    %45 = vector.broadcast %cst_14 : f32 to vector<16x64xf32>
    %46 = arith.select %39, %45, %44 : vector<16x64xi1>, vector<16x64xf32>
    %47 = arith.mulf %37, %37 : vector<16x64xf32>
    %48 = arith.mulf %47, %46 : vector<16x64xf32>
    %49 = vector.shape_cast %48 : vector<16x64xf32> to vector<1x16x64xf32>
    %cst_15 = arith.constant dense<0.000000e+00> : vector<1xf32>
    %50 = vector.multi_reduction <add>, %49, %cst_15 [1, 2] : vector<1x16x64xf32> to vector<1xf32>
    %51 = vector.shape_cast %50 : vector<1xf32> to vector<1x1x1xf32>
    %52 = vector.extract %51[0, 0, 0] : f32 from vector<1x1x1xf32>
    %53 = vector.shape_cast %2 : vector<16x1xf32> to vector<1x16x1xf32>
    %cst_16 = arith.constant dense<0.000000e+00> : vector<1xf32>
    %54 = vector.multi_reduction <add>, %53, %cst_16 [1, 2] : vector<1x16x1xf32> to vector<1xf32>
    %55 = vector.shape_cast %54 : vector<1xf32> to vector<1x1x1xf32>
    %56 = vector.extract %55[0, 0, 0] : f32 from vector<1x1x1xf32>
    %57 = arith.divf %52, %56 : f32
    %c0_17 = arith.constant 0 : index
    %c0_18 = arith.constant 0 : index
    %58 = memref.load %arg2[%c0_17, %c0_18] : memref<1x1xf32, #tpu.memory_space<smem>>
    memref.store %57, %arg2[%c0_17, %c0_18] : memref<1x1xf32, #tpu.memory_space<smem>>
    return
  }
}

</mosaic_0001>

<llo_original>
// kernel: tpu_custom_call.1
$region0: #{tpu_custom_call.1}
  #allocation0 [shape = 'u32[]', space=smem, size = 0x4, offset = 0x4, fixed_abs, tag = 'smem constant byte address 0x4 - core index']
  #allocation1 [shape = 'u32[144,128]{1,0:T(1,128)}', space=vmem, size = 0x12000, scoped, tag = 'internal scratch']
  %s0 = inlined_call_operand.hbm [shape: f32[16,128], index: 0, kind: input, shape index: {}]
  %s1 = inlined_call_operand.hbm [shape: f32[208,128], index: 1, kind: input, shape index: {}]
  %s2 = inlined_call_operand.hbm [shape: f32[1,1], index: 2, kind: output, shape index: {}]
  %s3 = sld [smem:[#allocation0]]
  $region26: #{tpu_custom_call.1} parent=0
    _
  %s5 = ssub.s32 1, %s3
  %s6 = scalar_select 0, %s5, %s3
  $region1: #{tpu_custom_call.1} parent=0
    #allocation2 [shape = 'u8[8192]{0}', space=vmem, size = 0x2000, scoped, tag = 'input window, operand 0, single buffered']
    #allocation3 [shape = 's32[1]{0}', space=sflag, size = 0x4, scoped, tag = 'scoped memory for tpu_custom_call.1']
    #allocation4 [shape = 's32[1]{0}', space=sflag, size = 0x4, scoped, tag = 'scoped memory for tpu_custom_call.1']
    #allocation5 [shape = 'u8[106496]{0}', space=vmem, size = 0x1a000, scoped, tag = 'input window, operand 1, single buffered']
    #allocation6 [shape = 's32[1]{0}', space=sflag, size = 0x4, scoped, tag = 'scoped memory for tpu_custom_call.1']
    #allocation7 [shape = 'u8[512]{0}', space=smem, size = 0x200, scoped, tag = 'output window, operand 0, single buffered']
    %7 = vsyncpa [#allocation3], 0
    %8 = vsyncpa [#allocation6], 0
    %9 = vsyncpa [#allocation4], 0
    // Predicated region
    $region2: #{tpu_custom_call.1} parent=1 // pred_check
      _
    $region3: #{tpu_custom_call.1} parent=1 // pred_check_branch
      %11 = sbr.rel (0) target = $region5
    $region4: #{tpu_custom_call.1} parent=1 // pred_region
      %s13 = ssub.s32 256, 256
      %14 = vsyncadd [#allocation3], %s13
      %s15 = sshll.u32 [#allocation2], 4
      %s16 = int_to_ptr.vmem [resolvable:$true] %s15
      %21 = dma.hbm_to_vmem [thread:$0]  %s0, 256, %s16, [#allocation3], 128, 128, 8
    $region5: #{tpu_custom_call.1} parent=1 // pred_fallthru
      _
    // Predicated region
    $region6: #{tpu_custom_call.1} parent=1 // pred_check
      _
    $region7: #{tpu_custom_call.1} parent=1 // pred_check_branch
      %23 = sbr.rel (0) target = $region9
    $region8: #{tpu_custom_call.1} parent=1 // pred_region
      %s25 = ssub.s32 3328, 3328
      %26 = vsyncadd [#allocation6], %s25
      %s27 = sshll.u32 [#allocation5], 4
      %s28 = int_to_ptr.vmem [resolvable:$true] %s27
      %33 = dma.hbm_to_vmem [thread:$0]  %s1, 3328, %s28, [#allocation6], 128, 128, 8
    $region9: #{tpu_custom_call.1} parent=1 // pred_fallthru
      _
    // Predicated region
    $region10: #{tpu_custom_call.1} parent=1 // pred_check
      _
    $region11: #{tpu_custom_call.1} parent=1 // pred_check_branch
      %35 = sbr.rel (0) target = $region13
    $region12: #{tpu_custom_call.1} parent=1 // pred_region
      %36 = dma.done [#allocation3], 256
    $region13: #{tpu_custom_call.1} parent=1 // pred_fallthru
      _
    // Predicated region
    $region14: #{tpu_custom_call.1} parent=1 // pred_check
      _
    $region15: #{tpu_custom_call.1} parent=1 // pred_check_branch
      %38 = sbr.rel (0) target = $region17
    $region16: #{tpu_custom_call.1} parent=1 // pred_region
      %39 = dma.done [#allocation6], 3328
    $region17: #{tpu_custom_call.1} parent=1 // pred_fallthru
      _
    %v40 = vld [vmem:[#allocation2] sm:$0xff]
    %v41 = vld [vmem:[#allocation2 + $0x8] sm:$0xff]
    %43 = vset.pattern.permute.xlu0 1
    %44 = vperm.xlu0 %43, %v40
    %v45 = vpop.permute.xlu0 %44
    %48 = vset.pattern.permute.xlu0 1
    %49 = vperm.xlu0 %48, %v41
    %v50 = vpop.permute.xlu0 %49
    %v52 = vmul.f32 %v45, %v40
    %v53 = vmul.f32 %v50, %v41
    %v54 = vmul.f32 %v40, 0.99999
    %v55 = vmul.f32 %v41, 0.99999
    %v56 = vadd.f32 %v54, 1e-05
    %v57 = vadd.f32 %v55, 1e-05
    %v58 = vsub.f32 1.0, %v40
    %v59 = vsub.f32 1.0, %v41
    %61 = vset.pattern.permute.xlu0 0
    %62 = vperm.xlu0 %61, %v58
    %v63 = vpop.permute.xlu0 %62
    %66 = vset.pattern.permute.xlu0 0
    %67 = vperm.xlu0 %66, %v59
    %v68 = vpop.permute.xlu0 %67
    %v70 = vmul.f32 %v63, %v40
    %v71 = vmul.f32 %v68, %v41
    %73 = vset.pattern.permute.xlu0 0
    %74 = vperm.xlu0 %73, %v56
    %v75 = vpop.permute.xlu0 %74
    %78 = vset.pattern.permute.xlu0 0
    %79 = vperm.xlu0 %78, %v57
    %v80 = vpop.permute.xlu0 %79
    %v82 = vmul.f32 %v75, %v52
    %v83 = vmul.f32 %v80, %v53
    %86 = vrot.lane.b32.xlu0 %v82, 64
    %v87 = vpop.permute.xlu0 %86
    %88 = vrot.lane.b32.xlu0 %v83, 64
    %v89 = vpop.permute.xlu0 %88
    %v92 = vadd.f32 %v70, %v87
    %v93 = vadd.f32 %v71, %v89
    %v94 = vlaneseq
    %v95 = vand.u32 %v94, 127
    %vm96 = vcmp.lt.s32.totalorder %v95, 2
    %v97 = vsel %vm96, %v40, %v92
    %v98 = vsel %vm96, %v41, %v93
    %v99 = vmul.f32 %v52, 0.99999
    %v100 = vmul.f32 %v53, 0.99999
    %101 = vrot.lane.b32.xlu0 %v40, 64
    %v102 = vpop.permute.xlu0 %101
    %103 = vrot.lane.b32.xlu0 %v41, 64
    %v104 = vpop.permute.xlu0 %103
    %v107 = vsub.f32 %v99, %v102
    %v108 = vsub.f32 %v100, %v104
    %v109 = vld [vmem:[#allocation5] sm:$0xff]
    %v110 = vld [vmem:[#allocation5 + $0x8] sm:$0xff]
    %v111 = vld [vmem:[#allocation5 + $0x10] sm:$0xff]
    %v112 = vld [vmem:[#allocation5 + $0x18] sm:$0xff]
    %v113 = vld [vmem:[#allocation5 + $0x20] sm:$0xff]
    %v114 = vld [vmem:[#allocation5 + $0x28] sm:$0xff]
    %v115 = vld [vmem:[#allocation5 + $0x30] sm:$0xff]
    %v116 = vld [vmem:[#allocation5 + $0x38] sm:$0xff]
    %v117 = vld [vmem:[#allocation5 + $0x40] sm:$0x1]
    %v118 = vld [vmem:[#allocation5 + $0x48] sm:$0xff]
    %v119 = vld [vmem:[#allocation5 + $0x50] sm:$0xff]
    %v120 = vld [vmem:[#allocation5 + $0x58] sm:$0xff]
    %v121 = vld [vmem:[#allocation5 + $0x60] sm:$0xff]
    %v122 = vld [vmem:[#allocation5 + $0x68] sm:$0xff]
    %v123 = vld [vmem:[#allocation5 + $0x70] sm:$0xff]
    %v124 = vld [vmem:[#allocation5 + $0x78] sm:$0xff]
    %v125 = vld [vmem:[#allocation5 + $0x80] sm:$0xff]
    %v126 = vld [vmem:[#allocation5 + $0x88] sm:$0xff]
    %v127 = vld [vmem:[#allocation5 + $0x90] sm:$0xff]
    %v128 = vld [vmem:[#allocation5 + $0x98] sm:$0xff]
    %v129 = vld [vmem:[#allocation5 + $0xa0] sm:$0xff]
    %v130 = vld [vmem:[#allocation5 + $0xa8] sm:$0xff]
    %v131 = vld [vmem:[#allocation5 + $0xb0] sm:$0xff]
    %v132 = vld [vmem:[#allocation5 + $0xb8] sm:$0xff]
    %v133 = vld [vmem:[#allocation5 + $0xc0] sm:$0xff]
    %v134 = vld [vmem:[#allocation5 + $0xc8] sm:$0x1]
    %v135 = vlaneseq
    %v136 = vshrl.u32 %v135, 7
    %v137 = vsub.s32 0, %v136
    %v138 = vrot.slane %v117, %v137
    %vm139 = vcmask 523264
    %v141 = vsel %vm139, %v97, 0
    %v144 = vsel %vm139, %v98, 0
    %146 = vmatprep.subr.mxu0 0.0
    %147 = vmatpush1.msra.mxu0 0.0
    %148 = vmatprep.subr.mxu0 0.0
    %149 = vmatpush1.msra.mxu0 0.0
    %150 = vmatprep.subr.mxu0 0.0
    %151 = vmatpush1.msra.mxu0 0.0
    %152 = vmatprep.subr.mxu0 0.0
    %153 = vmatpush1.msra.mxu0 0.0
    %154 = vmatprep.subr.mxu0 0.0
    %155 = vmatpush1.msra.mxu0 0.0
    %156 = vmatprep.subr.mxu0 0.0
    %157 = vmatpush1.msra.mxu0 0.0
    %158 = vmatprep.subr.mxu0 0.0
    %159 = vmatpush1.msra.mxu0 0.0
    %160 = vmatprep.subr.mxu0 0.0
    %161 = vmatpush1.msra.mxu0 0.0
    %162 = vmatprep.subr.mxu0 0.0
    %163 = vmatpush1.msra.mxu0 %v116
    %164 = vmatprep.subr.mxu0 0.0
    %165 = vmatpush1.msra.mxu0 %v115
    %166 = vmatprep.subr.mxu0 0.0
    %167 = vmatpush1.msra.mxu0 %v114
    %168 = vmatprep.subr.mxu0 0.0
    %169 = vmatpush1.msra.mxu0 %v113
    %170 = vmatprep.subr.mxu0 0.0
    %171 = vmatpush1.msra.mxu0 %v112
    %172 = vmatprep.subr.mxu0 0.0
    %173 = vmatpush1.msra.mxu0 %v111
    %174 = vmatprep.subr.mxu0 0.0
    %175 = vmatpush1.msra.mxu0 %v110
    %176 = vmatprep.subr.mxu0 0.0
    %177 = vmatpush1.msra.mxu0 %v109
    %178 = vmatprep.subr.mxu0 0.0
    %179 = vmatpush2.msra.mxu0 0.0
    %180 = vmatprep.subr.mxu0 0.0
    %181 = vmatpush2.msra.mxu0 0.0
    %182 = vmatprep.subr.mxu0 0.0
    %183 = vmatpush2.msra.mxu0 0.0
    %184 = vmatprep.subr.mxu0 0.0
    %185 = vmatpush2.msra.mxu0 0.0
    %186 = vmatprep.subr.mxu0 0.0
    %187 = vmatpush2.msra.mxu0 0.0
    %188 = vmatprep.subr.mxu0 0.0
    %189 = vmatpush2.msra.mxu0 0.0
    %190 = vmatprep.subr.mxu0 0.0
    %191 = vmatpush2.msra.mxu0 0.0
    %192 = vmatprep.subr.mxu0 0.0
    %193 = vmatpush2.msra.mxu0 0.0
    %194 = vmatprep.subr.mxu0 0.0
    %195 = vmatpush2.msra.mxu0 0.0
    %196 = vmatprep.subr.mxu0 0.0
    %197 = vmatpush2.msra.mxu0 0.0
    %198 = vmatprep.subr.mxu0 0.0
    %199 = vmatpush2.msra.mxu0 0.0
    %200 = vmatprep.subr.mxu0 0.0
    %201 = vmatpush2.msra.mxu0 0.0
    %202 = vmatprep.subr.mxu0 0.0
    %203 = vmatpush2.msra.mxu0 0.0
    %204 = vmatprep.subr.mxu0 0.0
    %205 = vmatpush2.msra.mxu0 0.0
    %206 = vmatprep.subr.mxu0 0.0
    %207 = vmatpush2.msra.mxu0 0.0
    %208 = vmatprep.subr.mxu0 0.0
    %209 = vmatpush2.msra.mxu0 0.0
    %210 = vmatprep.mubr.f32.mxu0 0.0
    %211 = vmatmul.mubr.f32.gmra.mxu0 %v141
    %v212 = vpop.f32.mrf.mxu0
    %v213 = vadd.f32 %v138, %v212
    %v214 = vpop.f32.mrf.mxu0
    %215 = vmatprep.mubr.f32.mxu0 0.0
    %216 = vmatmul.mubr.f32.gmra.mxu0 %v144
    %v217 = vpop.f32.mrf.mxu0
    %v218 = vadd.f32 %v138, %v217
    %v219 = vpop.f32.mrf.mxu0
    %220 = vdwg.mxu0
    %v221 = vtanh.pop %v213
    %v222 = vtanh.pop %v218
    %v223 = vlaneseq
    %v224 = vshrl.u32 %v223, 7
    %v225 = vsub.s32 0, %v224
    %v226 = vrot.slane %v134, %v225
    %227 = vmatprep.subr.mxu0 0.0
    %228 = vmatpush1.msra.mxu0 %v133
    %229 = vmatprep.subr.mxu0 0.0
    %230 = vmatpush1.msra.mxu0 %v132
    %231 = vmatprep.subr.mxu0 0.0
    %232 = vmatpush1.msra.mxu0 %v131
    %233 = vmatprep.subr.mxu0 0.0
    %234 = vmatpush1.msra.mxu0 %v130
    %235 = vmatprep.subr.mxu0 0.0
    %236 = vmatpush1.msra.mxu0 %v129
    %237 = vmatprep.subr.mxu0 0.0
    %238 = vmatpush1.msra.mxu0 %v128
    %239 = vmatprep.subr.mxu0 0.0
    %240 = vmatpush1.msra.mxu0 %v127
    %241 = vmatprep.subr.mxu0 0.0
    %242 = vmatpush1.msra.mxu0 %v126
    %243 = vmatprep.subr.mxu0 0.0
    %244 = vmatpush1.msra.mxu0 %v125
    %245 = vmatprep.subr.mxu0 0.0
    %246 = vmatpush1.msra.mxu0 %v124
    %247 = vmatprep.subr.mxu0 0.0
    %248 = vmatpush1.msra.mxu0 %v123
    %249 = vmatprep.subr.mxu0 0.0
    %250 = vmatpush1.msra.mxu0 %v122
    %251 = vmatprep.subr.mxu0 0.0
    %252 = vmatpush1.msra.mxu0 %v121
    %253 = vmatprep.subr.mxu0 0.0
    %254 = vmatpush1.msra.mxu0 %v120
    %255 = vmatprep.subr.mxu0 0.0
    %256 = vmatpush1.msra.mxu0 %v119
    %257 = vmatprep.subr.mxu0 0.0
    %258 = vmatpush1.msra.mxu0 %v118
    %259 = vmatprep.subr.mxu0 0.0
    %260 = vmatpush2.msra.mxu0 0.0
    %261 = vmatprep.subr.mxu0 0.0
    %262 = vmatpush2.msra.mxu0 0.0
    %263 = vmatprep.subr.mxu0 0.0
    %264 = vmatpush2.msra.mxu0 0.0
    %265 = vmatprep.subr.mxu0 0.0
    %266 = vmatpush2.msra.mxu0 0.0
    %267 = vmatprep.subr.mxu0 0.0
    %268 = vmatpush2.msra.mxu0 0.0
    %269 = vmatprep.subr.mxu0 0.0
    %270 = vmatpush2.msra.mxu0 0.0
    %271 = vmatprep.subr.mxu0 0.0
    %272 = vmatpush2.msra.mxu0 0.0
    %273 = vmatprep.subr.mxu0 0.0
    %274 = vmatpush2.msra.mxu0 0.0
    %275 = vmatprep.subr.mxu0 0.0
    %276 = vmatpush2.msra.mxu0 0.0
    %277 = vmatprep.subr.mxu0 0.0
    %278 = vmatpush2.msra.mxu0 0.0
    %279 = vmatprep.subr.mxu0 0.0
    %280 = vmatpush2.msra.mxu0 0.0
    %281 = vmatprep.subr.mxu0 0.0
    %282 = vmatpush2.msra.mxu0 0.0
    %283 = vmatprep.subr.mxu0 0.0
    %284 = vmatpush2.msra.mxu0 0.0
    %285 = vmatprep.subr.mxu0 0.0
    %286 = vmatpush2.msra.mxu0 0.0
    %287 = vmatprep.subr.mxu0 0.0
    %288 = vmatpush2.msra.mxu0 0.0
    %289 = vmatprep.subr.mxu0 0.0
    %290 = vmatpush2.msra.mxu0 0.0
    %291 = vmatprep.mubr.f32.mxu0 0.0
    %292 = vmatmul.mubr.f32.gmra.mxu0 %v221
    %v293 = vpop.f32.mrf.mxu0
    %v294 = vadd.f32 %v226, %v293
    %v295 = vpop.f32.mrf.mxu0
    %296 = vmatprep.mubr.f32.mxu0 0.0
    %297 = vmatmul.mubr.f32.gmra.mxu0 %v222
    %v298 = vpop.f32.mrf.mxu0
    %v299 = vadd.f32 %v226, %v298
    %v300 = vpop.f32.mrf.mxu0
    %301 = vdwg.mxu0
    %304 = vrot.lane.b32.xlu0 %v107, 64
    %v305 = vpop.permute.xlu0 %304
    %306 = vrot.lane.b32.xlu0 %v108, 64
    %v307 = vpop.permute.xlu0 %306
    %v310 = vsub.f32 %v294, %v305
    %v311 = vsub.f32 %v299, %v307
    %vm312 = vcmp.lt.s32.totalorder %v95, 22
    %v313 = vsel %vm312, 0.5, 1.0
    %v314 = vsel %vm96, 0.0, %v313
    %v315 = vmul.f32 %v310, %v310
    %v316 = vmul.f32 %v311, %v311
    %v317 = vmul.f32 %v315, %v314
    %v318 = vmul.f32 %v316, %v314
    %v319 = vsel %vm139, %v317, 0.0
    %v320 = vsel %vm139, %v318, 0.0
    %v321 = vadd.f32 %v319, %v320
    %322 = vadd.xlane.f32.xlu0 %v321
    %v323 = vpop.xlane.xlu0 %322
    %v324 = vrot.slane %v323, 4
    %v325 = vadd.f32 %v323, %v324
    %v326 = vrot.slane %v325, 2
    %v327 = vadd.f32 %v325, %v326
    %v328 = vrot.slane %v327, 1
    %v329 = vadd.f32 %v327, %v328
    %s330 = vtos %v329
    %331 = vrot.lane.b32.xlu0 %v40, 127
    %v332 = vpop.permute.xlu0 %331
    %333 = vrot.lane.b32.xlu0 %v41, 127
    %v334 = vpop.permute.xlu0 %333
    %vm337 = vcmask 7168
    %v338 = vsel %vm337, %v332, 0.0
    %v339 = vsel %vm337, %v334, 0.0
    %v340 = vadd.f32 %v338, %v339
    %341 = vadd.xlane.f32.xlu0 %v340
    %v342 = vpop.xlane.xlu0 %341
    %v343 = vrot.slane %v342, 4
    %v344 = vadd.f32 %v342, %v343
    %v345 = vrot.slane %v344, 2
    %v346 = vadd.f32 %v344, %v345
    %v347 = vrot.slane %v346, 1
    %v348 = vadd.f32 %v346, %v347
    %s349 = vtos %v348
    %v350 = vstv %s349
    %v351 = vrcp.pop %v350
    %s352 = vtos %v351
    %s353 = smul.f32 %s330, %s352
    %s354 = scalar_lea.smem [#allocation7], 0
    %355 = sst [smem:[%s354]] %s353
    // Predicated region
    $region18: #{tpu_custom_call.1} parent=1 // pred_check
      _
    $region19: #{tpu_custom_call.1} parent=1 // pred_check_branch
      %357 = sbr.rel (0) target = $region21
    $region20: #{tpu_custom_call.1} parent=1 // pred_region
      %s359 = ssub.s32 16, 16
      %360 = vsyncadd [#allocation4], %s359
      %363 = dma.smem_to_hbm [#allocation7], 16, %s2, [#allocation4]
    $region21: #{tpu_custom_call.1} parent=1 // pred_fallthru
      _
    // Predicated region
    $region22: #{tpu_custom_call.1} parent=1 // pred_check
      _
    $region23: #{tpu_custom_call.1} parent=1 // pred_check_branch
      %365 = sbr.rel (0) target = $region25
    $region24: #{tpu_custom_call.1} parent=1 // pred_region
      %366 = dma.done [#allocation4], 16
    $region25: #{tpu_custom_call.1} parent=1 // pred_fallthru
      _
    %367 = sfence
    %368 = vsyncpa [#allocation3], 1
    %369 = vsyncpa [#allocation6], 1
    %370 = vsyncpa [#allocation4], 1

</llo_original>
